<compile_context>
chip_gen: v7x
topology: tpu7x:2x2x1
jax: 0.10.0
libtpu: 0.0.40
codegen_flags: <defaults>
</compile_context>

<pallas_src>
import jax
import jax.numpy as jnp
from jax.experimental import pallas as pl
from jax.experimental.pallas import tpu as pltpu

# Module-fixed sizes (from the PyTorch spec).
IN1, OUT1, OUT2 = 4, 3, 3
OUT_ROWS = 8        # sublane-padded output rows (rows 0..2 valid, 3..7 zero)
N_PARAMS = 32       # 27 valid scalars (12 + 3 + 9 + 3), padded to 32


def _round_up(a, m):
    return (a + m - 1) // m * m


def mlp_softmax_kernel(p_ref, x_ref, o_ref):
    # p_ref: (32,) f32 in SMEM  -- layout:
    #   [0:12]  w1[j, k] at 4*j + k        (layer1 weight, (3,4))
    #   [12:15] b1[j]                      (layer1 bias)
    #   [15:24] w2[j, k] at 15 + 3*j + k   (layer2 weight, (3,3))
    #   [24:27] b2[j]                      (layer2 bias)
    # x_ref: (4, Bb) f32 in VMEM -- batch on lanes, input features on sublanes.
    # o_ref: (8, Bb) f32 in VMEM -- rows 0..2 = softmax outputs, rows 3..7 = 0.
    x = x_ref[...]                                     # (4, Bb)

    # ---- layer1: h[j] = sum_k w1[j,k] * x[k] + b1[j]  (scalar-splat FMAs) ----
    h = []
    for j in range(OUT1):
        hj = x[0:1, :] * p_ref[4 * j + 0]
        hj = hj + x[1:2, :] * p_ref[4 * j + 1]
        hj = hj + x[2:3, :] * p_ref[4 * j + 2]
        hj = hj + x[3:4, :] * p_ref[4 * j + 3]
        hj = hj + p_ref[12 + j]
        h.append(hj)                                   # (1, Bb)

    # ---- layer2: y[j] = sum_k w2[j,k] * h[k] + b2[j] -------------------------
    y = []
    for j in range(OUT2):
        yj = h[0] * p_ref[15 + 3 * j + 0]
        yj = yj + h[1] * p_ref[15 + 3 * j + 1]
        yj = yj + h[2] * p_ref[15 + 3 * j + 2]
        yj = yj + p_ref[24 + j]
        y.append(yj)                                   # (1, Bb)

    # ---- softmax across the 3 feature rows (per-lane, VPU only) --------------
    m = jnp.maximum(jnp.maximum(y[0], y[1]), y[2])
    e0 = jnp.exp(y[0] - m)
    e1 = jnp.exp(y[1] - m)
    e2 = jnp.exp(y[2] - m)
    inv = 1.0 / (e0 + e1 + e2)                         # one exact divide/lane

    pad = jnp.zeros_like(e0)
    o_ref[...] = jnp.concatenate(
        [e0 * inv, e1 * inv, e2 * inv, pad, pad, pad, pad, pad], axis=0
    ).astype(o_ref.dtype)                              # full-block, lane-dense


def pytorch_nn_forward(x, w1, b1, w2, b2):
    """x: (B, 4). w1: (3, 4), b1: (3,), w2: (3, 3), b2: (3,) (PyTorch layout)."""
    B = x.shape[0]

    # Pack the 27 parameter scalars into one small SMEM array.
    params = jnp.zeros((N_PARAMS,), jnp.float32)
    params = params.at[0:12].set(w1.astype(jnp.float32).reshape(-1))
    params = params.at[12:15].set(b1.astype(jnp.float32).reshape(-1))
    params = params.at[15:24].set(w2.astype(jnp.float32).reshape(-1))
    params = params.at[24:27].set(b2.astype(jnp.float32).reshape(-1))

    # Batch on the lane axis: feed x transposed, (4, B_pad), lane-dense rows.
    xT = x.astype(jnp.float32).T                       # (4, B)

    if B <= 128:
        block_b = 128
    else:
        # >= 2 grid steps for large B (both v7x TensorCores), cap block at 1024.
        block_b = min(1024, _round_up((B + 1) // 2, 128))
    B_pad = _round_up(B, block_b)
    if B_pad != B:
        xT = jnp.pad(xT, ((0, 0), (0, B_pad - B)))     # padded cols -> sliced off

    grid = (B_pad // block_b,)

    out = pl.pallas_call(
        mlp_softmax_kernel,
        out_shape=jax.ShapeDtypeStruct((OUT_ROWS, B_pad), jnp.float32),
        grid=grid,
        in_specs=[
            pl.BlockSpec(memory_space=pltpu.MemorySpace.SMEM),   # params (32,)
            pl.BlockSpec((IN1, block_b), lambda i: (0, i)),      # x  (4, block_b)
        ],
        out_specs=pl.BlockSpec((OUT_ROWS, block_b), lambda i: (0, i)),
        compiler_params=pltpu.CompilerParams(
            dimension_semantics=("parallel",)),
    )(params, xT)

    # Drop sublane padding rows and batch padding columns; back to (B, 3).
    return out[:OUT2, :B].T


if __name__ == "__main__":
    key = jax.random.PRNGKey(0)
    k_x, k_w1, k_b1, k_w2, k_b2 = jax.random.split(key, 5)

    B = 8

    # Deterministic PyTorch-style init: U(-1/sqrt(fan_in), 1/sqrt(fan_in))
    bound1 = 1.0 / jnp.sqrt(jnp.float32(IN1))
    bound2 = 1.0 / jnp.sqrt(jnp.float32(OUT1))
    w1 = jax.random.uniform(k_w1, (OUT1, IN1), jnp.float32, -bound1, bound1)
    b1 = jax.random.uniform(k_b1, (OUT1,), jnp.float32, -bound1, bound1)
    w2 = jax.random.uniform(k_w2, (OUT2, OUT1), jnp.float32, -bound2, bound2)
    b2 = jax.random.uniform(k_b2, (OUT2,), jnp.float32, -bound2, bound2)

    x = jax.random.normal(k_x, (B, IN1), jnp.float32)

    y = pytorch_nn_forward(x, w1, b1, w2, b2)
    y = jax.block_until_ready(y)

    # Reference check in plain JAX (same math as the PyTorch module).
    h_ref = x @ w1.T + b1
    y_ref = jax.nn.softmax(h_ref @ w2.T + b2, axis=1)
    assert y.shape == (B, OUT2), f"bad output shape {y.shape}"
    assert jnp.allclose(y, y_ref, atol=1e-5, rtol=1e-5), "mismatch vs reference"
    assert jnp.allclose(jnp.sum(y, axis=1), 1.0, atol=1e-5), "softmax rows must sum to 1"

    print("KERNEL_OK")
</pallas_src>

<mosaic_0001>
module attributes {stable_mosaic.version = 11 : i64} {
  func.func @mlp_softmax_kernel(%arg0: i32, %arg1: memref<32xf32, #tpu.memory_space<smem>>, %arg2: memref<4x128xf32, #tpu.memory_space<vmem>>, %arg3: memref<8x128xf32, #tpu.memory_space<vmem>>) attributes {dimension_semantics = [#tpu.dimension_semantics<parallel>], iteration_bounds = array<i64: 1>, scalar_prefetch = 0 : i64, scratch_operands = 0 : i64, tpu.core_type = #tpu.core_type<tc>, window_params = [{transform_indices = @transform_0, window_bounds = array<i64: 32>}, {transform_indices = @transform_1, window_bounds = array<i64: 4, 128>}, {transform_indices = @transform_2, window_bounds = array<i64: 8, 128>}]} {
    %c0 = arith.constant 0 : index
    %c0_0 = arith.constant 0 : index
    %0 = vector.load %arg2[%c0, %c0_0] : memref<4x128xf32, #tpu.memory_space<vmem>>, vector<4x128xf32>
    %1 = vector.extract_strided_slice %0 {offsets = [0, 0], sizes = [1, 128], strides = [1, 1]} : vector<4x128xf32> to vector<1x128xf32>
    %c0_1 = arith.constant 0 : index
    %2 = memref.load %arg1[%c0_1] : memref<32xf32, #tpu.memory_space<smem>>
    %3 = vector.broadcast %2 : f32 to vector<1x128xf32>
    %4 = arith.mulf %1, %3 : vector<1x128xf32>
    %5 = vector.extract_strided_slice %0 {offsets = [1, 0], sizes = [1, 128], strides = [1, 1]} : vector<4x128xf32> to vector<1x128xf32>
    %c1 = arith.constant 1 : index
    %6 = memref.load %arg1[%c1] : memref<32xf32, #tpu.memory_space<smem>>
    %7 = vector.broadcast %6 : f32 to vector<1x128xf32>
    %8 = arith.mulf %5, %7 : vector<1x128xf32>
    %9 = arith.addf %4, %8 : vector<1x128xf32>
    %10 = vector.extract_strided_slice %0 {offsets = [2, 0], sizes = [1, 128], strides = [1, 1]} : vector<4x128xf32> to vector<1x128xf32>
    %c2 = arith.constant 2 : index
    %11 = memref.load %arg1[%c2] : memref<32xf32, #tpu.memory_space<smem>>
    %12 = vector.broadcast %11 : f32 to vector<1x128xf32>
    %13 = arith.mulf %10, %12 : vector<1x128xf32>
    %14 = arith.addf %9, %13 : vector<1x128xf32>
    %15 = vector.extract_strided_slice %0 {offsets = [3, 0], sizes = [1, 128], strides = [1, 1]} : vector<4x128xf32> to vector<1x128xf32>
    %c3 = arith.constant 3 : index
    %16 = memref.load %arg1[%c3] : memref<32xf32, #tpu.memory_space<smem>>
    %17 = vector.broadcast %16 : f32 to vector<1x128xf32>
    %18 = arith.mulf %15, %17 : vector<1x128xf32>
    %19 = arith.addf %14, %18 : vector<1x128xf32>
    %c12 = arith.constant 12 : index
    %20 = memref.load %arg1[%c12] : memref<32xf32, #tpu.memory_space<smem>>
    %21 = vector.broadcast %20 : f32 to vector<1x128xf32>
    %22 = arith.addf %19, %21 : vector<1x128xf32>
    %23 = vector.extract_strided_slice %0 {offsets = [0, 0], sizes = [1, 128], strides = [1, 1]} : vector<4x128xf32> to vector<1x128xf32>
    %c4 = arith.constant 4 : index
    %24 = memref.load %arg1[%c4] : memref<32xf32, #tpu.memory_space<smem>>
    %25 = vector.broadcast %24 : f32 to vector<1x128xf32>
    %26 = arith.mulf %23, %25 : vector<1x128xf32>
    %27 = vector.extract_strided_slice %0 {offsets = [1, 0], sizes = [1, 128], strides = [1, 1]} : vector<4x128xf32> to vector<1x128xf32>
    %c5 = arith.constant 5 : index
    %28 = memref.load %arg1[%c5] : memref<32xf32, #tpu.memory_space<smem>>
    %29 = vector.broadcast %28 : f32 to vector<1x128xf32>
    %30 = arith.mulf %27, %29 : vector<1x128xf32>
    %31 = arith.addf %26, %30 : vector<1x128xf32>
    %32 = vector.extract_strided_slice %0 {offsets = [2, 0], sizes = [1, 128], strides = [1, 1]} : vector<4x128xf32> to vector<1x128xf32>
    %c6 = arith.constant 6 : index
    %33 = memref.load %arg1[%c6] : memref<32xf32, #tpu.memory_space<smem>>
    %34 = vector.broadcast %33 : f32 to vector<1x128xf32>
    %35 = arith.mulf %32, %34 : vector<1x128xf32>
    %36 = arith.addf %31, %35 : vector<1x128xf32>
    %37 = vector.extract_strided_slice %0 {offsets = [3, 0], sizes = [1, 128], strides = [1, 1]} : vector<4x128xf32> to vector<1x128xf32>
    %c7 = arith.constant 7 : index
    %38 = memref.load %arg1[%c7] : memref<32xf32, #tpu.memory_space<smem>>
    %39 = vector.broadcast %38 : f32 to vector<1x128xf32>
    %40 = arith.mulf %37, %39 : vector<1x128xf32>
    %41 = arith.addf %36, %40 : vector<1x128xf32>
    %c13 = arith.constant 13 : index
    %42 = memref.load %arg1[%c13] : memref<32xf32, #tpu.memory_space<smem>>
    %43 = vector.broadcast %42 : f32 to vector<1x128xf32>
    %44 = arith.addf %41, %43 : vector<1x128xf32>
    %45 = vector.extract_strided_slice %0 {offsets = [0, 0], sizes = [1, 128], strides = [1, 1]} : vector<4x128xf32> to vector<1x128xf32>
    %c8 = arith.constant 8 : index
    %46 = memref.load %arg1[%c8] : memref<32xf32, #tpu.memory_space<smem>>
    %47 = vector.broadcast %46 : f32 to vector<1x128xf32>
    %48 = arith.mulf %45, %47 : vector<1x128xf32>
    %49 = vector.extract_strided_slice %0 {offsets = [1, 0], sizes = [1, 128], strides = [1, 1]} : vector<4x128xf32> to vector<1x128xf32>
    %c9 = arith.constant 9 : index
    %50 = memref.load %arg1[%c9] : memref<32xf32, #tpu.memory_space<smem>>
    %51 = vector.broadcast %50 : f32 to vector<1x128xf32>
    %52 = arith.mulf %49, %51 : vector<1x128xf32>
    %53 = arith.addf %48, %52 : vector<1x128xf32>
    %54 = vector.extract_strided_slice %0 {offsets = [2, 0], sizes = [1, 128], strides = [1, 1]} : vector<4x128xf32> to vector<1x128xf32>
    %c10 = arith.constant 10 : index
    %55 = memref.load %arg1[%c10] : memref<32xf32, #tpu.memory_space<smem>>
    %56 = vector.broadcast %55 : f32 to vector<1x128xf32>
    %57 = arith.mulf %54, %56 : vector<1x128xf32>
    %58 = arith.addf %53, %57 : vector<1x128xf32>
    %59 = vector.extract_strided_slice %0 {offsets = [3, 0], sizes = [1, 128], strides = [1, 1]} : vector<4x128xf32> to vector<1x128xf32>
    %c11 = arith.constant 11 : index
    %60 = memref.load %arg1[%c11] : memref<32xf32, #tpu.memory_space<smem>>
    %61 = vector.broadcast %60 : f32 to vector<1x128xf32>
    %62 = arith.mulf %59, %61 : vector<1x128xf32>
    %63 = arith.addf %58, %62 : vector<1x128xf32>
    %c14 = arith.constant 14 : index
    %64 = memref.load %arg1[%c14] : memref<32xf32, #tpu.memory_space<smem>>
    %65 = vector.broadcast %64 : f32 to vector<1x128xf32>
    %66 = arith.addf %63, %65 : vector<1x128xf32>
    %c15 = arith.constant 15 : index
    %67 = memref.load %arg1[%c15] : memref<32xf32, #tpu.memory_space<smem>>
    %68 = vector.broadcast %67 : f32 to vector<1x128xf32>
    %69 = arith.mulf %22, %68 : vector<1x128xf32>
    %c16 = arith.constant 16 : index
    %70 = memref.load %arg1[%c16] : memref<32xf32, #tpu.memory_space<smem>>
    %71 = vector.broadcast %70 : f32 to vector<1x128xf32>
    %72 = arith.mulf %44, %71 : vector<1x128xf32>
    %73 = arith.addf %69, %72 : vector<1x128xf32>
    %c17 = arith.constant 17 : index
    %74 = memref.load %arg1[%c17] : memref<32xf32, #tpu.memory_space<smem>>
    %75 = vector.broadcast %74 : f32 to vector<1x128xf32>
    %76 = arith.mulf %66, %75 : vector<1x128xf32>
    %77 = arith.addf %73, %76 : vector<1x128xf32>
    %c24 = arith.constant 24 : index
    %78 = memref.load %arg1[%c24] : memref<32xf32, #tpu.memory_space<smem>>
    %79 = vector.broadcast %78 : f32 to vector<1x128xf32>
    %80 = arith.addf %77, %79 : vector<1x128xf32>
    %c18 = arith.constant 18 : index
    %81 = memref.load %arg1[%c18] : memref<32xf32, #tpu.memory_space<smem>>
    %82 = vector.broadcast %81 : f32 to vector<1x128xf32>
    %83 = arith.mulf %22, %82 : vector<1x128xf32>
    %c19 = arith.constant 19 : index
    %84 = memref.load %arg1[%c19] : memref<32xf32, #tpu.memory_space<smem>>
    %85 = vector.broadcast %84 : f32 to vector<1x128xf32>
    %86 = arith.mulf %44, %85 : vector<1x128xf32>
    %87 = arith.addf %83, %86 : vector<1x128xf32>
    %c20 = arith.constant 20 : index
    %88 = memref.load %arg1[%c20] : memref<32xf32, #tpu.memory_space<smem>>
    %89 = vector.broadcast %88 : f32 to vector<1x128xf32>
    %90 = arith.mulf %66, %89 : vector<1x128xf32>
    %91 = arith.addf %87, %90 : vector<1x128xf32>
    %c25 = arith.constant 25 : index
    %92 = memref.load %arg1[%c25] : memref<32xf32, #tpu.memory_space<smem>>
    %93 = vector.broadcast %92 : f32 to vector<1x128xf32>
    %94 = arith.addf %91, %93 : vector<1x128xf32>
    %c21 = arith.constant 21 : index
    %95 = memref.load %arg1[%c21] : memref<32xf32, #tpu.memory_space<smem>>
    %96 = vector.broadcast %95 : f32 to vector<1x128xf32>
    %97 = arith.mulf %22, %96 : vector<1x128xf32>
    %c22 = arith.constant 22 : index
    %98 = memref.load %arg1[%c22] : memref<32xf32, #tpu.memory_space<smem>>
    %99 = vector.broadcast %98 : f32 to vector<1x128xf32>
    %100 = arith.mulf %44, %99 : vector<1x128xf32>
    %101 = arith.addf %97, %100 : vector<1x128xf32>
    %c23 = arith.constant 23 : index
    %102 = memref.load %arg1[%c23] : memref<32xf32, #tpu.memory_space<smem>>
    %103 = vector.broadcast %102 : f32 to vector<1x128xf32>
    %104 = arith.mulf %66, %103 : vector<1x128xf32>
    %105 = arith.addf %101, %104 : vector<1x128xf32>
    %c26 = arith.constant 26 : index
    %106 = memref.load %arg1[%c26] : memref<32xf32, #tpu.memory_space<smem>>
    %107 = vector.broadcast %106 : f32 to vector<1x128xf32>
    %108 = arith.addf %105, %107 : vector<1x128xf32>
    %109 = arith.maximumf %80, %94 : vector<1x128xf32>
    %110 = arith.maximumf %109, %108 : vector<1x128xf32>
    %111 = arith.subf %80, %110 : vector<1x128xf32>
    %112 = math.exp %111 : vector<1x128xf32>
    %113 = arith.subf %94, %110 : vector<1x128xf32>
    %114 = math.exp %113 : vector<1x128xf32>
    %115 = arith.subf %108, %110 : vector<1x128xf32>
    %116 = math.exp %115 : vector<1x128xf32>
    %117 = arith.addf %112, %114 : vector<1x128xf32>
    %118 = arith.addf %117, %116 : vector<1x128xf32>
    %cst = arith.constant 1.000000e+00 : f32
    %119 = vector.broadcast %cst : f32 to vector<1x128xf32>
    %120 = arith.divf %119, %118 : vector<1x128xf32>
    %cst_2 = arith.constant 0.000000e+00 : f32
    %121 = vector.broadcast %cst_2 : f32 to vector<1x128xf32>
    %122 = arith.mulf %112, %120 : vector<1x128xf32>
    %123 = arith.mulf %114, %120 : vector<1x128xf32>
    %124 = arith.mulf %116, %120 : vector<1x128xf32>
    %125 = tpu.concatenate %122, %123, %124, %121, %121, %121, %121, %121 in 0 : vector<1x128xf32>, vector<1x128xf32>, vector<1x128xf32>, vector<1x128xf32>, vector<1x128xf32>, vector<1x128xf32>, vector<1x128xf32>, vector<1x128xf32> -> vector<8x128xf32>
    %c0_3 = arith.constant 0 : index
    %c0_4 = arith.constant 0 : index
    %126 = vector.load %arg3[%c0_3, %c0_4] : memref<8x128xf32, #tpu.memory_space<vmem>>, vector<8x128xf32>
    tpu.vector_store %arg3[%c0_3, %c0_4], %125 {strides = array<i32>} : memref<8x128xf32, #tpu.memory_space<vmem>>, vector<8x128xf32>,
    return
  }
  func.func @transform_0(%arg0: i32) -> i32 {
    %c0_i32 = arith.constant 0 : i32
    %c0_i32_0 = arith.constant 0 : i32
    return %c0_i32 : i32
  }
  func.func @transform_1(%arg0: i32) -> (i32, i32) {
    %c0_i32 = arith.constant 0 : i32
    %c0_i32_0 = arith.constant 0 : i32
    return %c0_i32, %arg0 : i32, i32
  }
  func.func @transform_2(%arg0: i32) -> (i32, i32) {
    %c0_i32 = arith.constant 0 : i32
    %c0_i32_0 = arith.constant 0 : i32
    return %c0_i32, %arg0 : i32, i32
  }
}

</mosaic_0001>

<llo_original>
// kernel: tpu_custom_call.1
$region0: #{tpu_custom_call.1}
  #allocation0 [shape = 'u32[]', space=smem, size = 0x4, offset = 0x4, fixed_abs, tag = 'smem constant byte address 0x4 - core index']
  #allocation1 [shape = 'u32[144,128]{1,0:T(1,128)}', space=vmem, size = 0x12000, scoped, tag = 'internal scratch']
  %s0 = inlined_call_operand.hbm [shape: f32[32], index: 0, kind: input, shape index: {}]
  %s1 = inlined_call_operand.hbm [shape: f32[4,128], index: 1, kind: input, shape index: {}]
  %s2 = inlined_call_operand.hbm [shape: f32[8,128], index: 2, kind: output, shape index: {}]
  %s3 = sld [smem:[#allocation0]]
  $region26: #{tpu_custom_call.1} parent=0
    _
  %s5 = ssub.s32 1, %s3
  %s6 = scalar_select 0, %s5, %s3
  $region1: #{tpu_custom_call.1} parent=0
    #allocation2 [shape = 'u8[512]{0}', space=smem, size = 0x200, scoped, tag = 'input window, operand 0, single buffered']
    #allocation3 [shape = 's32[1]{0}', space=sflag, size = 0x4, scoped, tag = 'scoped memory for tpu_custom_call.1']
    #allocation4 [shape = 's32[1]{0}', space=sflag, size = 0x4, scoped, tag = 'scoped memory for tpu_custom_call.1']
    #allocation5 [shape = 's32[1]{0}', space=sflag, size = 0x4, scoped, tag = 'scoped memory for tpu_custom_call.1']
    #allocation6 [shape = 'u8[2048]{0}', space=vmem, size = 0x800, scoped, tag = 'input window, operand 1, single buffered']
    #allocation7 [shape = 'u8[4096]{0}', space=vmem, size = 0x1000, scoped, tag = 'output window, operand 0, single buffered']
    %7 = vsyncpa [#allocation5], 0
    %8 = vsyncpa [#allocation3], 0
    %9 = vsyncpa [#allocation4], 0
    // Predicated region
    $region2: #{tpu_custom_call.1} parent=1 // pred_check
      _
    $region3: #{tpu_custom_call.1} parent=1 // pred_check_branch
      %11 = sbr.rel (0) target = $region5
    $region4: #{tpu_custom_call.1} parent=1 // pred_region
      %s13 = ssub.s32 16, 16
      %14 = vsyncadd [#allocation5], %s13
      %17 = dma.hbm_to_smem %s0, 16, [#allocation2], [#allocation5]
    $region5: #{tpu_custom_call.1} parent=1 // pred_fallthru
      _
    // Predicated region
    $region6: #{tpu_custom_call.1} parent=1 // pred_check
      _
    $region7: #{tpu_custom_call.1} parent=1 // pred_check_branch
      %19 = sbr.rel (0) target = $region9
    $region8: #{tpu_custom_call.1} parent=1 // pred_region
      %s21 = ssub.s32 64, 64
      %22 = vsyncadd [#allocation3], %s21
      %s24 = sshll.u32 [#allocation6], 4
      %s25 = int_to_ptr.vmem [resolvable:$true] %s24
      %27 = dma.hbm_to_vmem [thread:$0]  %s1, 64, %s25, [#allocation3]
    $region9: #{tpu_custom_call.1} parent=1 // pred_fallthru
      _
    // Predicated region
    $region10: #{tpu_custom_call.1} parent=1 // pred_check
      _
    $region11: #{tpu_custom_call.1} parent=1 // pred_check_branch
      %29 = sbr.rel (0) target = $region13
    $region12: #{tpu_custom_call.1} parent=1 // pred_region
      %30 = dma.done [#allocation5], 16
    $region13: #{tpu_custom_call.1} parent=1 // pred_fallthru
      _
    // Predicated region
    $region14: #{tpu_custom_call.1} parent=1 // pred_check
      _
    $region15: #{tpu_custom_call.1} parent=1 // pred_check_branch
      %32 = sbr.rel (0) target = $region17
    $region16: #{tpu_custom_call.1} parent=1 // pred_region
      %33 = dma.done [#allocation3], 64
    $region17: #{tpu_custom_call.1} parent=1 // pred_fallthru
      _
    %34 = sfence
    %v35 = vld [vmem:[#allocation6] sm:$0xf]
    %s36 = sld [smem:[#allocation2]]
    %v37 = vstv %s36
    %v38 = vmul.f32 %v35, %v37
    %s39 = sld [smem:[#allocation2 + $0x1]]
    %v40 = vstv %s39
    %v41 = vmul.f32 %v35, %v40
    %v43 = vrot.slane %v41, 1
    %v45 = vadd.f32 %v38, %v43
    %s46 = sld [smem:[#allocation2 + $0x2]]
    %v47 = vstv %s46
    %v48 = vmul.f32 %v35, %v47
    %v50 = vrot.slane %v48, 2
    %v52 = vadd.f32 %v45, %v50
    %s53 = sld [smem:[#allocation2 + $0x3]]
    %v54 = vstv %s53
    %v55 = vmul.f32 %v35, %v54
    %v57 = vrot.slane %v55, 3
    %v59 = vadd.f32 %v52, %v57
    %s60 = sld [smem:[#allocation2 + $0xc]]
    %v61 = vstv %s60
    %v62 = vadd.f32 %v59, %v61
    %s63 = sld [smem:[#allocation2 + $0x4]]
    %v64 = vstv %s63
    %v65 = vmul.f32 %v35, %v64
    %s66 = sld [smem:[#allocation2 + $0x5]]
    %v67 = vstv %s66
    %v68 = vmul.f32 %v35, %v67
    %v70 = vrot.slane %v68, 1
    %v72 = vadd.f32 %v65, %v70
    %s73 = sld [smem:[#allocation2 + $0x6]]
    %v74 = vstv %s73
    %v75 = vmul.f32 %v35, %v74
    %v77 = vrot.slane %v75, 2
    %v79 = vadd.f32 %v72, %v77
    %s80 = sld [smem:[#allocation2 + $0x7]]
    %v81 = vstv %s80
    %v82 = vmul.f32 %v35, %v81
    %v84 = vrot.slane %v82, 3
    %v86 = vadd.f32 %v79, %v84
    %s87 = sld [smem:[#allocation2 + $0xd]]
    %v88 = vstv %s87
    %v89 = vadd.f32 %v86, %v88
    %s90 = sld [smem:[#allocation2 + $0x8]]
    %v91 = vstv %s90
    %v92 = vmul.f32 %v35, %v91
    %s93 = sld [smem:[#allocation2 + $0x9]]
    %v94 = vstv %s93
    %v95 = vmul.f32 %v35, %v94
    %v97 = vrot.slane %v95, 1
    %v99 = vadd.f32 %v92, %v97
    %s100 = sld [smem:[#allocation2 + $0xa]]
    %v101 = vstv %s100
    %v102 = vmul.f32 %v35, %v101
    %v104 = vrot.slane %v102, 2
    %v106 = vadd.f32 %v99, %v104
    %s107 = sld [smem:[#allocation2 + $0xb]]
    %v108 = vstv %s107
    %v109 = vmul.f32 %v35, %v108
    %v111 = vrot.slane %v109, 3
    %v113 = vadd.f32 %v106, %v111
    %s114 = sld [smem:[#allocation2 + $0xe]]
    %v115 = vstv %s114
    %v116 = vadd.f32 %v113, %v115
    %s117 = sld [smem:[#allocation2 + $0xf]]
    %v118 = vstv %s117
    %v119 = vmul.f32 %v62, %v118
    %s120 = sld [smem:[#allocation2 + $0x10]]
    %v121 = vstv %s120
    %v122 = vmul.f32 %v89, %v121
    %v123 = vadd.f32 %v119, %v122
    %s124 = sld [smem:[#allocation2 + $0x11]]
    %v125 = vstv %s124
    %v126 = vmul.f32 %v116, %v125
    %v127 = vadd.f32 %v123, %v126
    %s128 = sld [smem:[#allocation2 + $0x18]]
    %v129 = vstv %s128
    %v130 = vadd.f32 %v127, %v129
    %s131 = sld [smem:[#allocation2 + $0x12]]
    %v132 = vstv %s131
    %v133 = vmul.f32 %v62, %v132
    %s134 = sld [smem:[#allocation2 + $0x13]]
    %v135 = vstv %s134
    %v136 = vmul.f32 %v89, %v135
    %v137 = vadd.f32 %v133, %v136
    %s138 = sld [smem:[#allocation2 + $0x14]]
    %v139 = vstv %s138
    %v140 = vmul.f32 %v116, %v139
    %v141 = vadd.f32 %v137, %v140
    %s142 = sld [smem:[#allocation2 + $0x19]]
    %v143 = vstv %s142
    %v144 = vadd.f32 %v141, %v143
    %s145 = sld [smem:[#allocation2 + $0x15]]
    %v146 = vstv %s145
    %v147 = vmul.f32 %v62, %v146
    %s148 = sld [smem:[#allocation2 + $0x16]]
    %v149 = vstv %s148
    %v150 = vmul.f32 %v89, %v149
    %v151 = vadd.f32 %v147, %v150
    %s152 = sld [smem:[#allocation2 + $0x17]]
    %v153 = vstv %s152
    %v154 = vmul.f32 %v116, %v153
    %v155 = vadd.f32 %v151, %v154
    %s156 = sld [smem:[#allocation2 + $0x1a]]
    %v157 = vstv %s156
    %v158 = vadd.f32 %v155, %v157
    %v159 = vmax.f32 %v130, %v144
    %v160 = vmax.f32 %v159, %v158
    %v161 = vsub.f32 %v130, %v160
    %v162 = vmul.f32 %v161, 1.442695
    %v163 = vpow.pop %v162
    %v164 = vsub.f32 %v144, %v160
    %v165 = vmul.f32 %v164, 1.442695
    %v166 = vpow.pop %v165
    %v167 = vsub.f32 %v158, %v160
    %v168 = vmul.f32 %v167, 1.442695
    %v169 = vpow.pop %v168
    %v170 = vadd.f32 %v163, %v166
    %v171 = vadd.f32 %v170, %v169
    %v172 = vrcp.pop %v171
    %v173 = vmul.f32 1.0, %v172
    %v174 = vmul.f32 %v163, %v173
    %v175 = vmul.f32 %v166, %v173
    %v176 = vmul.f32 %v169, %v173
    %v178 = vrot.slane %v175, 7
    %v181 = vrot.slane %v176, 6
    %vm183 = vcmask 1040384
    %v184 = vsel %vm183, %v174, %v178
    %vm185 = vcmask 1041408
    %v186 = vsel %vm185, %v184, %v181
    %vm187 = vcmask 1042432
    %v188 = vsel %vm187, %v186, 0.0
    %vm189 = vcmask 1043456
    %v190 = vsel %vm189, %v188, 0.0
    %vm191 = vcmask 1044480
    %v192 = vsel %vm191, %v190, 0.0
    %vm193 = vcmask 1045504
    %v194 = vsel %vm193, %v192, 0.0
    %vm195 = vcmask 1046528
    %v196 = vsel %vm195, %v194, 0.0
    %197 = vst [vmem:[#allocation7] sm:$0xff] %v196
    // Predicated region
    $region18: #{tpu_custom_call.1} parent=1 // pred_check
      _
    $region19: #{tpu_custom_call.1} parent=1 // pred_check_branch
      %199 = sbr.rel (0) target = $region21
    $region20: #{tpu_custom_call.1} parent=1 // pred_region
      %s201 = ssub.s32 128, 128
      %202 = vsyncadd [#allocation4], %s201
      %s204 = sshll.u32 [#allocation7], 4
      %s205 = int_to_ptr.vmem [resolvable:$true] %s204
      %207 = dma.vmem_to_hbm [thread:$0]  %s205, 128, %s2, [#allocation4]
    $region21: #{tpu_custom_call.1} parent=1 // pred_fallthru
      _
    // Predicated region
    $region22: #{tpu_custom_call.1} parent=1 // pred_check
      _
    $region23: #{tpu_custom_call.1} parent=1 // pred_check_branch
      %209 = sbr.rel (0) target = $region25
    $region24: #{tpu_custom_call.1} parent=1 // pred_region
      %210 = dma.done [#allocation4], 128
    $region25: #{tpu_custom_call.1} parent=1 // pred_fallthru
      _
    %211 = vsyncpa [#allocation3], 1
    %212 = vsyncpa [#allocation4], 1
    %213 = vsyncpa [#allocation5], 1

</llo_original>
